<compile_context>
chip_gen: v5e
topology: v5e:2x2
jax: 0.10.0
libtpu: 0.0.40
codegen_flags: <defaults>
</compile_context>

<pallas_src>
import functools

import jax
import jax.numpy as jnp
from jax.experimental import pallas as pl
from jax.experimental.pallas import tpu as pltpu


def _round_up(n: int, m: int) -> int:
    return ((n + m - 1) // m) * m


def _mxu_align() -> int:
    """256-alignment on v6e/v7x (2x256x256 MXU), 128 on v5e and older."""
    try:
        kind = jax.devices()[0].device_kind.lower()
    except Exception:
        return 128
    if "v6" in kind or "v7" in kind:
        return 256
    return 128


def _leaky_relu(x, slope=0.2):
    return jnp.where(x > 0, x, slope * x)


def _resident_spec(shape):
    """Full-array block that never moves across the batch grid.

    Single-buffered (Buffered(1)): the block index is constant, so there is
    nothing to double-buffer; this halves resident-weight VMEM on v7x.
    """
    index_map = lambda i: (0,) * len(shape)
    try:
        return pl.BlockSpec(shape, index_map, pipeline_mode=pl.Buffered(1))
    except TypeError:  # older BlockSpec without pipeline_mode kwarg
        return pl.BlockSpec(shape, index_map)


def _choose_batch_tile(B: int) -> int:
    """Large tiles for HBM-roofline efficiency, but >= 2 blocks when possible
    so v7x's two TensorCores both get work (grid axis is 'parallel')."""
    if B >= 1024:
        return 512
    if B >= 256:
        return _round_up(pl.cdiv(B, 2), 128)
    if B >= 64:
        return _round_up(pl.cdiv(B, 2), 16)
    return _round_up(max(B, 16), 16)  # multiple of 16: bf16 sublane packing


def _vmem_budget_bytes(tb, dp, hp, lp) -> int:
    x_tile = 2 * tb * dp * 2                 # double-buffered bf16 x tile
    out_tiles = 2 * (2 * tb * lp * 4)        # two f32 outputs, double-buffered
    weights = (dp * hp + hp * hp + hp * 2 * lp) * 2   # bf16, single-buffered
    biases = (2 * hp + 2 * lp) * 4
    temps = tb * hp * (4 + 2) + tb * 2 * lp * 4       # f32 h + bf16 cast + head
    est = x_tile + out_tiles + weights + biases + temps
    # generous margin, clamped to v7x physical VMEM (64 MiB)
    return int(min(max(2 * est + (8 << 20), 32 << 20), 64 << 20))


# ---------------------------------------------------------------------------
# Kernel
# ---------------------------------------------------------------------------
def encoder_kernel(x_ref, w1_ref, b1_ref, w2_ref, b2_ref, wh_ref, bh_ref,
                   mean_ref, logvar_ref):
    # x / weights are bf16; all accumulation + elementwise in f32.
    h = jnp.dot(x_ref[...], w1_ref[...], preferred_element_type=jnp.float32)
    h = _leaky_relu(h + b1_ref[...])

    h = jnp.dot(h.astype(jnp.bfloat16), w2_ref[...],
                preferred_element_type=jnp.float32)
    h = _leaky_relu(h + b2_ref[...])

    # Fused mean||log_var head: one MXU pass, then two lane-dense stores
    # (Lp is a multiple of 128, so both slices are lane-aligned).
    out = jnp.dot(h.astype(jnp.bfloat16), wh_ref[...],
                  preferred_element_type=jnp.float32)
    out = out + bh_ref[...]
    lp = mean_ref.shape[-1]
    mean_ref[...] = out[:, :lp].astype(mean_ref.dtype)
    logvar_ref[...] = out[:, lp:].astype(logvar_ref.dtype)


# ---------------------------------------------------------------------------
# One-time parameter preparation (hoisted out of the per-call path)
# ---------------------------------------------------------------------------
def prepare_params(params, *, align=None):
    """Pad weights/biases to MXU alignment, fuse the two heads, cast weights
    to bf16. Called ONCE; the forward pass only pads/casts x per call."""
    if align is None:
        align = _mxu_align()
    D, H = params["w1"].shape
    L = params["wm"].shape[1]
    Dp, Hp, Lp = _round_up(D, align), _round_up(H, align), _round_up(L, align)

    def pad_w(w, rp, cp):
        return jnp.pad(w, ((0, rp - w.shape[0]), (0, cp - w.shape[1])))

    def pad_b(b, cp):
        return jnp.pad(b, ((0, 0), (0, cp - b.shape[1])))

    prep = dict(
        w1=pad_w(params["w1"], Dp, Hp).astype(jnp.bfloat16),
        b1=pad_b(params["b1"], Hp).astype(jnp.float32),
        w2=pad_w(params["w2"], Hp, Hp).astype(jnp.bfloat16),
        b2=pad_b(params["b2"], Hp).astype(jnp.float32),
        # Fused heads: [Hp, 2*Lp]; each head padded to Lp so slicing is static.
        wh=jnp.concatenate([pad_w(params["wm"], Hp, Lp),
                            pad_w(params["wv"], Hp, Lp)], axis=1
                           ).astype(jnp.bfloat16),
        bh=jnp.concatenate([pad_b(params["bm"], Lp),
                            pad_b(params["bv"], Lp)], axis=1
                           ).astype(jnp.float32),
    )
    return jax.tree_util.tree_map(lambda a: a.block_until_ready(), prep)


# ---------------------------------------------------------------------------
# Forward pass
# ---------------------------------------------------------------------------
@functools.partial(jax.jit, static_argnames=("latent_dim",))
def encoder_forward(x, prep, *, latent_dim):
    """x: [B, input_dim] f32. prep: output of prepare_params.

    Returns (mean, log_var), each [B, latent_dim] float32.
    """
    B, D = x.shape
    Dp, Hp = prep["w1"].shape
    Lp = prep["wh"].shape[1] // 2
    L = latent_dim

    TB = _choose_batch_tile(B)
    Bp = _round_up(B, TB)
    n_blocks = Bp // TB

    # Only per-call data movement: pad + cast x (zero padding is exact).
    xp = jnp.pad(x, ((0, Bp - B), (0, Dp - D))).astype(jnp.bfloat16)

    in_specs = [
        pl.BlockSpec((TB, Dp), lambda i: (i, 0)),   # streamed x tile
        _resident_spec(prep["w1"].shape),
        _resident_spec(prep["b1"].shape),
        _resident_spec(prep["w2"].shape),
        _resident_spec(prep["b2"].shape),
        _resident_spec(prep["wh"].shape),
        _resident_spec(prep["bh"].shape),
    ]
    out_specs = (
        pl.BlockSpec((TB, Lp), lambda i: (i, 0)),   # mean
        pl.BlockSpec((TB, Lp), lambda i: (i, 0)),   # log_var
    )
    out_shape = (
        jax.ShapeDtypeStruct((Bp, Lp), jnp.float32),
        jax.ShapeDtypeStruct((Bp, Lp), jnp.float32),
    )

    flops = 2 * Bp * (Dp * Hp + Hp * Hp + Hp * 2 * Lp)
    bytes_accessed = (
        Bp * Dp * 2                                   # x (bf16)
        + (Dp * Hp + Hp * Hp + Hp * 2 * Lp) * 2       # weights (bf16)
        + (2 * Hp + 2 * Lp) * 4                       # biases (f32)
        + 2 * Bp * Lp * 4                             # outputs (f32)
    )

    mean_p, logvar_p = pl.pallas_call(
        encoder_kernel,
        out_shape=out_shape,
        grid_spec=pltpu.PrefetchScalarGridSpec(
            num_scalar_prefetch=0,
            grid=(n_blocks,),
            in_specs=in_specs,
            out_specs=out_specs,
        ),
        compiler_params=pltpu.CompilerParams(
            dimension_semantics=("parallel",),
            vmem_limit_bytes=_vmem_budget_bytes(TB, Dp, Hp, Lp),
        ),
        cost_estimate=pl.CostEstimate(
            flops=flops, transcendentals=0, bytes_accessed=bytes_accessed),
    )(xp, prep["w1"], prep["b1"], prep["w2"], prep["b2"],
      prep["wh"], prep["bh"])

    # One slice per output (each reads only its own [Bp, Lp] buffer).
    return mean_p[:B, :L], logvar_p[:B, :L]


# ---------------------------------------------------------------------------
# Synthetic params + matched-precision reference
# ---------------------------------------------------------------------------
def init_params(key, input_dim, hidden_dim, latent_dim):
    """Deterministic synthetic parameters. Weights stored as [in, out]
    (PyTorch Linear weight transposed); biases as [1, out]."""
    ks = jax.random.split(key, 8)

    def lin(kw, kb, fan_in, fan_out):
        bound = 1.0 / jnp.sqrt(fan_in)
        w = jax.random.uniform(kw, (fan_in, fan_out), jnp.float32, -bound, bound)
        b = jax.random.uniform(kb, (1, fan_out), jnp.float32, -bound, bound)
        return w, b

    w1, b1 = lin(ks[0], ks[1], input_dim, hidden_dim)
    w2, b2 = lin(ks[2], ks[3], hidden_dim, hidden_dim)
    wm, bm = lin(ks[4], ks[5], hidden_dim, latent_dim)
    wv, bv = lin(ks[6], ks[7], hidden_dim, latent_dim)
    return dict(w1=w1, b1=b1, w2=w2, b2=b2, wm=wm, bm=bm, wv=wv, bv=bv)


def encoder_ref(x, p):
    """Pure-JAX reference with the same bf16-weight / f32-accumulate recipe."""
    bf = lambda a: a.astype(jnp.bfloat16)
    lrelu = lambda t: jnp.where(t > 0, t, 0.2 * t)
    h = lrelu(jnp.dot(bf(x), bf(p["w1"]), preferred_element_type=jnp.float32) + p["b1"])
    h = lrelu(jnp.dot(bf(h), bf(p["w2"]), preferred_element_type=jnp.float32) + p["b2"])
    mean = jnp.dot(bf(h), bf(p["wm"]), preferred_element_type=jnp.float32) + p["bm"]
    logv = jnp.dot(bf(h), bf(p["wv"]), preferred_element_type=jnp.float32) + p["bv"]
    return mean, logv


if __name__ == "__main__":
    # Small shapes consistent with the module (module defaults hidden=400,
    # latent=200; scaled down here). The wrapper pads to MXU granularity.
    batch, input_dim, hidden_d, latent_d = 8, 64, 32, 16

    key = jax.random.PRNGKey(0)
    kx, kp = jax.random.split(key)
    x = jax.random.normal(kx, (batch, input_dim), jnp.float32)
    params = init_params(kp, input_dim, hidden_d, latent_d)

    # One-time padding/casting of the parameters (hoisted out of the forward).
    prep = prepare_params(params)

    mean, log_var = encoder_forward(x, prep, latent_dim=latent_d)
    mean, log_var = jax.block_until_ready((mean, log_var))

    # Correctness check against the matched-precision pure-JAX reference.
    mean_ref, logvar_ref = encoder_ref(x, params)
    assert mean.shape == (batch, latent_d) and log_var.shape == (batch, latent_d)
    assert jnp.allclose(mean, mean_ref, atol=3e-3, rtol=3e-3)
    assert jnp.allclose(log_var, logvar_ref, atol=3e-3, rtol=3e-3)

    print("KERNEL_OK")
</pallas_src>

<mosaic_0001>
module attributes {stable_mosaic.version = 11 : i64} {
  func.func @encoder_kernel(%arg0: i32, %arg1: memref<16x128xbf16, #tpu.memory_space<vmem>>, %arg2: memref<128x128xbf16, #tpu.memory_space<vmem>>, %arg3: memref<1x128xf32, #tpu.memory_space<vmem>>, %arg4: memref<128x128xbf16, #tpu.memory_space<vmem>>, %arg5: memref<1x128xf32, #tpu.memory_space<vmem>>, %arg6: memref<128x256xbf16, #tpu.memory_space<vmem>>, %arg7: memref<1x256xf32, #tpu.memory_space<vmem>>, %arg8: memref<16x128xf32, #tpu.memory_space<vmem>>, %arg9: memref<16x128xf32, #tpu.memory_space<vmem>>) attributes {dimension_semantics = [#tpu.dimension_semantics<parallel>], iteration_bounds = array<i64: 1>, scalar_prefetch = 0 : i64, scratch_operands = 0 : i64, tpu.core_type = #tpu.core_type<tc>, window_params = [{transform_indices = @transform_0, window_bounds = array<i64: 16, 128>}, {pipeline_mode = #tpu.pipeline_mode<synchronous>, transform_indices = @transform_1, window_bounds = array<i64: 128, 128>}, {pipeline_mode = #tpu.pipeline_mode<synchronous>, transform_indices = @transform_2, window_bounds = array<i64: 1, 128>}, {pipeline_mode = #tpu.pipeline_mode<synchronous>, transform_indices = @transform_3, window_bounds = array<i64: 128, 128>}, {pipeline_mode = #tpu.pipeline_mode<synchronous>, transform_indices = @transform_4, window_bounds = array<i64: 1, 128>}, {pipeline_mode = #tpu.pipeline_mode<synchronous>, transform_indices = @transform_5, window_bounds = array<i64: 128, 256>}, {pipeline_mode = #tpu.pipeline_mode<synchronous>, transform_indices = @transform_6, window_bounds = array<i64: 1, 256>}, {transform_indices = @transform_7, window_bounds = array<i64: 16, 128>}, {transform_indices = @transform_8, window_bounds = array<i64: 16, 128>}]} {
    %c0 = arith.constant 0 : index
    %c0_0 = arith.constant 0 : index
    %0 = vector.load %arg1[%c0, %c0_0] : memref<16x128xbf16, #tpu.memory_space<vmem>>, vector<16x128xbf16>
    %c0_1 = arith.constant 0 : index
    %c0_2 = arith.constant 0 : index
    %1 = vector.load %arg2[%c0_1, %c0_2] : memref<128x128xbf16, #tpu.memory_space<vmem>>, vector<128x128xbf16>
    %cst = arith.constant dense<0.000000e+00> : vector<16x128xf32>
    %2 = tpu.matmul %0, %1, %cst {dimension_numbers = #tpu.dot_dimension_numbers<[1], [0], [0], [1], [0, 0, 1, 1], [], []>} : vector<16x128xbf16>, vector<128x128xbf16>, vector<16x128xf32> -> vector<16x128xf32>
    %c0_3 = arith.constant 0 : index
    %c0_4 = arith.constant 0 : index
    %3 = vector.load %arg3[%c0_3, %c0_4] : memref<1x128xf32, #tpu.memory_space<vmem>>, vector<1x128xf32>
    %4 = vector.broadcast %3 : vector<1x128xf32> to vector<16x128xf32>
    %5 = arith.addf %2, %4 : vector<16x128xf32>
    %cst_5 = arith.constant 0.000000e+00 : f32
    %6 = vector.broadcast %cst_5 : f32 to vector<16x128xf32>
    %7 = arith.cmpf ogt, %5, %6 : vector<16x128xf32>
    %cst_6 = arith.constant 2.000000e-01 : f32
    %8 = vector.broadcast %cst_6 : f32 to vector<16x128xf32>
    %9 = arith.mulf %8, %5 : vector<16x128xf32>
    %10 = arith.select %7, %5, %9 : vector<16x128xi1>, vector<16x128xf32>
    %11 = arith.truncf %10 : vector<16x128xf32> to vector<16x128xbf16>
    %c0_7 = arith.constant 0 : index
    %c0_8 = arith.constant 0 : index
    %12 = vector.load %arg4[%c0_7, %c0_8] : memref<128x128xbf16, #tpu.memory_space<vmem>>, vector<128x128xbf16>
    %cst_9 = arith.constant dense<0.000000e+00> : vector<16x128xf32>
    %13 = tpu.matmul %11, %12, %cst_9 {dimension_numbers = #tpu.dot_dimension_numbers<[1], [0], [0], [1], [0, 0, 1, 1], [], []>} : vector<16x128xbf16>, vector<128x128xbf16>, vector<16x128xf32> -> vector<16x128xf32>
    %c0_10 = arith.constant 0 : index
    %c0_11 = arith.constant 0 : index
    %14 = vector.load %arg5[%c0_10, %c0_11] : memref<1x128xf32, #tpu.memory_space<vmem>>, vector<1x128xf32>
    %15 = vector.broadcast %14 : vector<1x128xf32> to vector<16x128xf32>
    %16 = arith.addf %13, %15 : vector<16x128xf32>
    %cst_12 = arith.constant 0.000000e+00 : f32
    %17 = vector.broadcast %cst_12 : f32 to vector<16x128xf32>
    %18 = arith.cmpf ogt, %16, %17 : vector<16x128xf32>
    %cst_13 = arith.constant 2.000000e-01 : f32
    %19 = vector.broadcast %cst_13 : f32 to vector<16x128xf32>
    %20 = arith.mulf %19, %16 : vector<16x128xf32>
    %21 = arith.select %18, %16, %20 : vector<16x128xi1>, vector<16x128xf32>
    %22 = arith.truncf %21 : vector<16x128xf32> to vector<16x128xbf16>
    %c0_14 = arith.constant 0 : index
    %c0_15 = arith.constant 0 : index
    %23 = vector.load %arg6[%c0_14, %c0_15] : memref<128x256xbf16, #tpu.memory_space<vmem>>, vector<128x256xbf16>
    %cst_16 = arith.constant dense<0.000000e+00> : vector<16x256xf32>
    %24 = tpu.matmul %22, %23, %cst_16 {dimension_numbers = #tpu.dot_dimension_numbers<[1], [0], [0], [1], [0, 0, 1, 1], [], []>} : vector<16x128xbf16>, vector<128x256xbf16>, vector<16x256xf32> -> vector<16x256xf32>
    %c0_17 = arith.constant 0 : index
    %c0_18 = arith.constant 0 : index
    %25 = vector.load %arg7[%c0_17, %c0_18] : memref<1x256xf32, #tpu.memory_space<vmem>>, vector<1x256xf32>
    %26 = vector.broadcast %25 : vector<1x256xf32> to vector<16x256xf32>
    %27 = arith.addf %24, %26 : vector<16x256xf32>
    %28 = vector.extract_strided_slice %27 {offsets = [0, 0], sizes = [16, 128], strides = [1, 1]} : vector<16x256xf32> to vector<16x128xf32>
    %c0_19 = arith.constant 0 : index
    %c0_20 = arith.constant 0 : index
    %29 = vector.load %arg8[%c0_19, %c0_20] : memref<16x128xf32, #tpu.memory_space<vmem>>, vector<16x128xf32>
    tpu.vector_store %arg8[%c0_19, %c0_20], %28 {strides = array<i32>} : memref<16x128xf32, #tpu.memory_space<vmem>>, vector<16x128xf32>,
    %30 = vector.extract_strided_slice %27 {offsets = [0, 128], sizes = [16, 128], strides = [1, 1]} : vector<16x256xf32> to vector<16x128xf32>
    %c0_21 = arith.constant 0 : index
    %c0_22 = arith.constant 0 : index
    %31 = vector.load %arg9[%c0_21, %c0_22] : memref<16x128xf32, #tpu.memory_space<vmem>>, vector<16x128xf32>
    tpu.vector_store %arg9[%c0_21, %c0_22], %30 {strides = array<i32>} : memref<16x128xf32, #tpu.memory_space<vmem>>, vector<16x128xf32>,
    return
  }
  func.func @transform_0(%arg0: i32) -> (i32, i32) {
    %c0_i32 = arith.constant 0 : i32
    %c0_i32_0 = arith.constant 0 : i32
    return %arg0, %c0_i32 : i32, i32
  }
  func.func @transform_1(%arg0: i32) -> (i32, i32) {
    %c0_i32 = arith.constant 0 : i32
    %c0_i32_0 = arith.constant 0 : i32
    %c0_i32_1 = arith.constant 0 : i32
    return %c0_i32, %c0_i32_0 : i32, i32
  }
  func.func @transform_2(%arg0: i32) -> (i32, i32) {
    %c0_i32 = arith.constant 0 : i32
    %c0_i32_0 = arith.constant 0 : i32
    %c0_i32_1 = arith.constant 0 : i32
    return %c0_i32, %c0_i32_0 : i32, i32
  }
  func.func @transform_3(%arg0: i32) -> (i32, i32) {
    %c0_i32 = arith.constant 0 : i32
    %c0_i32_0 = arith.constant 0 : i32
    %c0_i32_1 = arith.constant 0 : i32
    return %c0_i32, %c0_i32_0 : i32, i32
  }
  func.func @transform_4(%arg0: i32) -> (i32, i32) {
    %c0_i32 = arith.constant 0 : i32
    %c0_i32_0 = arith.constant 0 : i32
    %c0_i32_1 = arith.constant 0 : i32
    return %c0_i32, %c0_i32_0 : i32, i32
  }
  func.func @transform_5(%arg0: i32) -> (i32, i32) {
    %c0_i32 = arith.constant 0 : i32
    %c0_i32_0 = arith.constant 0 : i32
    %c0_i32_1 = arith.constant 0 : i32
    return %c0_i32, %c0_i32_0 : i32, i32
  }
  func.func @transform_6(%arg0: i32) -> (i32, i32) {
    %c0_i32 = arith.constant 0 : i32
    %c0_i32_0 = arith.constant 0 : i32
    %c0_i32_1 = arith.constant 0 : i32
    return %c0_i32, %c0_i32_0 : i32, i32
  }
  func.func @transform_7(%arg0: i32) -> (i32, i32) {
    %c0_i32 = arith.constant 0 : i32
    %c0_i32_0 = arith.constant 0 : i32
    return %arg0, %c0_i32 : i32, i32
  }
  func.func @transform_8(%arg0: i32) -> (i32, i32) {
    %c0_i32 = arith.constant 0 : i32
    %c0_i32_0 = arith.constant 0 : i32
    return %arg0, %c0_i32 : i32, i32
  }
}

</mosaic_0001>

<llo_original>
// kernel: encoder_forward.1
$region0: #{encoder_forward.1}
  #allocation0 [shape = 'u32[]', space=smem, size = 0x4, offset = 0x4, fixed_abs, tag = 'smem constant byte address 0x4 - core index']
  #allocation1 [shape = 'u32[72,128]{1,0:T(1,128)}', space=vmem, size = 0x9000, scoped, tag = 'internal scratch']
  %s0 = inlined_call_operand.vmem [shape: bf16[16,128], index: 0, kind: input, shape index: {}]
  %s1 = inlined_call_operand.hbm [shape: bf16[128,128], index: 1, kind: input, shape index: {}]
  %s2 = inlined_call_operand.vmem [shape: f32[1,128], index: 2, kind: input, shape index: {}]
  %s3 = inlined_call_operand.hbm [shape: bf16[128,128], index: 3, kind: input, shape index: {}]
  %s4 = inlined_call_operand.vmem [shape: f32[1,128], index: 4, kind: input, shape index: {}]
  %s5 = inlined_call_operand.hbm [shape: bf16[128,256], index: 5, kind: input, shape index: {}]
  %s6 = inlined_call_operand.vmem [shape: f32[1,256], index: 6, kind: input, shape index: {}]
  %s7 = inlined_call_operand.vmem [shape: f32[16,128], index: 7, kind: output, shape index: {0}]
  %s8 = inlined_call_operand.vmem [shape: f32[16,128], index: 8, kind: output, shape index: {1}]
  %9 = xla_tuple %s7, %s8
  %s10 = sld [smem:[#allocation0]]
  $region58: #{encoder_forward.1} parent=0
    _
  %s12 = ssub.s32 1, %s10
  %s13 = scalar_select 0, %s12, %s10
  $region1: #{encoder_forward.1} parent=0
    #allocation2 [shape = 'u8[32768]{0}', space=vmem, size = 0x8000, scoped, tag = 'input window, operand 1, single buffered']
    #allocation3 [shape = 's32[1]{0}', space=sflag, size = 0x4, scoped, tag = 'scoped memory for encoder_forward.1']
    #allocation4 [shape = 'u8[32768]{0}', space=vmem, size = 0x8000, scoped, tag = 'input window, operand 3, single buffered']
    #allocation5 [shape = 's32[1]{0}', space=sflag, size = 0x4, scoped, tag = 'scoped memory for encoder_forward.1']
    #allocation6 [shape = 'u8[65536]{0}', space=vmem, size = 0x10000, scoped, tag = 'input window, operand 5, single buffered']
    %14 = vsyncpa [#allocation3], 0
    %15 = vsyncpa [#allocation5], 0
    // Predicated region
    $region2: #{encoder_forward.1} parent=1 // pred_check
      _
    $region3: #{encoder_forward.1} parent=1 // pred_check_branch
      %17 = sbr.rel (0) target = $region5
    $region4: #{encoder_forward.1} parent=1 // pred_region
      _
    $region5: #{encoder_forward.1} parent=1 // pred_fallthru
      _
    // Predicated region
    $region6: #{encoder_forward.1} parent=1 // pred_check
      _
    $region7: #{encoder_forward.1} parent=1 // pred_check_branch
      %19 = sbr.rel (0) target = $region9
    $region8: #{encoder_forward.1} parent=1 // pred_region
      %21 = vsyncadd [#allocation3], 0
      %s22 = sshll.u32 %s1, 4
      %s23 = int_to_ptr.hbm [resolvable:$true] %s22
      %s24 = sshll.u32 [#allocation2], 4
      %s25 = int_to_ptr.vmem [resolvable:$true] %s24
      %30 = dma.hbm_to_vmem [thread:$0]  %s23, 1024, %s25, [#allocation3], 64, 64, 4
    $region9: #{encoder_forward.1} parent=1 // pred_fallthru
      _
    // Predicated region
    $region10: #{encoder_forward.1} parent=1 // pred_check
      _
    $region11: #{encoder_forward.1} parent=1 // pred_check_branch
      %32 = sbr.rel (0) target = $region13
    $region12: #{encoder_forward.1} parent=1 // pred_region
      _
    $region13: #{encoder_forward.1} parent=1 // pred_fallthru
      _
    // Predicated region
    $region14: #{encoder_forward.1} parent=1 // pred_check
      _
    $region15: #{encoder_forward.1} parent=1 // pred_check_branch
      %34 = sbr.rel (0) target = $region17
    $region16: #{encoder_forward.1} parent=1 // pred_region
      %36 = vsyncadd [#allocation5], 0
      %s37 = sshll.u32 %s3, 4
      %s38 = int_to_ptr.hbm [resolvable:$true] %s37
      %s39 = sshll.u32 [#allocation4], 4
      %s40 = int_to_ptr.vmem [resolvable:$true] %s39
      %45 = dma.hbm_to_vmem [thread:$0]  %s38, 1024, %s40, [#allocation5], 64, 64, 4
    $region17: #{encoder_forward.1} parent=1 // pred_fallthru
      _
    // Predicated region
    $region18: #{encoder_forward.1} parent=1 // pred_check
      _
    $region19: #{encoder_forward.1} parent=1 // pred_check_branch
      %47 = sbr.rel (0) target = $region21
    $region20: #{encoder_forward.1} parent=1 // pred_region
      _
    $region21: #{encoder_forward.1} parent=1 // pred_fallthru
      _
    // Predicated region
    $region22: #{encoder_forward.1} parent=1 // pred_check
      _
    $region23: #{encoder_forward.1} parent=1 // pred_check_branch
      %49 = sbr.rel (0) target = $region25
    $region24: #{encoder_forward.1} parent=1 // pred_region
      %51 = vsyncadd [#allocation5], 0
      %s52 = sshll.u32 %s5, 4
      %s53 = int_to_ptr.hbm [resolvable:$true] %s52
      %s54 = sshll.u32 [#allocation6], 4
      %s55 = int_to_ptr.vmem [resolvable:$true] %s54
      %60 = dma.hbm_to_vmem [thread:$0]  %s53, 2048, %s55, [#allocation5], 128, 128, 8
    $region25: #{encoder_forward.1} parent=1 // pred_fallthru
      _
    // Predicated region
    $region26: #{encoder_forward.1} parent=1 // pred_check
      _
    $region27: #{encoder_forward.1} parent=1 // pred_check_branch
      %62 = sbr.rel (0) target = $region29
    $region28: #{encoder_forward.1} parent=1 // pred_region
      _
    $region29: #{encoder_forward.1} parent=1 // pred_fallthru
      _
    // Predicated region
    $region30: #{encoder_forward.1} parent=1 // pred_check
      _
    $region31: #{encoder_forward.1} parent=1 // pred_check_branch
      %64 = sbr.rel (0) target = $region33
    $region32: #{encoder_forward.1} parent=1 // pred_region
      %66 = dma.done [#allocation3], 1024
    $region33: #{encoder_forward.1} parent=1 // pred_fallthru
      _
    // Predicated region
    $region34: #{encoder_forward.1} parent=1 // pred_check
      _
    $region35: #{encoder_forward.1} parent=1 // pred_check_branch
      %68 = sbr.rel (0) target = $region37
    $region36: #{encoder_forward.1} parent=1 // pred_region
      %70 = dma.done [#allocation5], 1024
    $region37: #{encoder_forward.1} parent=1 // pred_fallthru
      _
    // Predicated region
    $region38: #{encoder_forward.1} parent=1 // pred_check
      _
    $region39: #{encoder_forward.1} parent=1 // pred_check_branch
      %72 = sbr.rel (0) target = $region41
    $region40: #{encoder_forward.1} parent=1 // pred_region
      %74 = dma.done [#allocation5], 2048
    $region41: #{encoder_forward.1} parent=1 // pred_fallthru
      _
    %v75 = vld [vmem:[%s0] sm:$0xf]
    %v76 = vld [vmem:[%s0 + $0x4] sm:$0xf]
    %v77 = vld [vmem:[#allocation2] sm:$0xf]
    %v78 = vld [vmem:[#allocation2 + $0x4] sm:$0xf]
    %v79 = vld [vmem:[#allocation2 + $0x8] sm:$0xf]
    %v80 = vld [vmem:[#allocation2 + $0xc] sm:$0xf]
    %v81 = vld [vmem:[#allocation2 + $0x10] sm:$0xf]
    %v82 = vld [vmem:[#allocation2 + $0x14] sm:$0xf]
    %v83 = vld [vmem:[#allocation2 + $0x18] sm:$0xf]
    %v84 = vld [vmem:[#allocation2 + $0x1c] sm:$0xf]
    %v85 = vld [vmem:[#allocation2 + $0x20] sm:$0xf]
    %v86 = vld [vmem:[#allocation2 + $0x24] sm:$0xf]
    %v87 = vld [vmem:[#allocation2 + $0x28] sm:$0xf]
    %v88 = vld [vmem:[#allocation2 + $0x2c] sm:$0xf]
    %v89 = vld [vmem:[#allocation2 + $0x30] sm:$0xf]
    %v90 = vld [vmem:[#allocation2 + $0x34] sm:$0xf]
    %v91 = vld [vmem:[#allocation2 + $0x38] sm:$0xf]
    %v92 = vld [vmem:[#allocation2 + $0x3c] sm:$0xf]
    %v93 = vld [vmem:[%s2] sm:$0x1]
    %v95 = vperm.slane %v93, 0
    %v99 = vunpack.c.l.b16 %v75
    %v100 = vunpack.c.l.b16 %v76
    %v101 = vpack.c.b16 %v100, %v99
    %v119 = vunpack.c.l.b16 %v77
    %v120 = vunpack.c.l.b16 %v78
    %v121 = vunpack.c.l.b16 %v79
    %v122 = vunpack.c.l.b16 %v80
    %v123 = vunpack.c.l.b16 %v81
    %v124 = vunpack.c.l.b16 %v82
    %v125 = vunpack.c.l.b16 %v83
    %v126 = vunpack.c.l.b16 %v84
    %v127 = vunpack.c.l.b16 %v85
    %v128 = vunpack.c.l.b16 %v86
    %v129 = vunpack.c.l.b16 %v87
    %v130 = vunpack.c.l.b16 %v88
    %v131 = vunpack.c.l.b16 %v89
    %v132 = vunpack.c.l.b16 %v90
    %v133 = vunpack.c.l.b16 %v91
    %v134 = vunpack.c.l.b16 %v92
    %v135 = vpack.c.b16 %v120, %v119
    %v136 = vpack.c.b16 %v122, %v121
    %v137 = vpack.c.b16 %v124, %v123
    %v138 = vpack.c.b16 %v126, %v125
    %v139 = vpack.c.b16 %v128, %v127
    %v140 = vpack.c.b16 %v130, %v129
    %v141 = vpack.c.b16 %v132, %v131
    %v142 = vpack.c.b16 %v134, %v133
    %151 = vmatpush.bf16.msra.mxu0 %v142
    %152 = vmatpush.bf16.msra.mxu0 %v141
    %153 = vmatpush.bf16.msra.mxu0 %v140
    %154 = vmatpush.bf16.msra.mxu0 %v139
    %155 = vmatpush.bf16.msra.mxu0 %v138
    %156 = vmatpush.bf16.msra.mxu0 %v137
    %157 = vmatpush.bf16.msra.mxu0 %v136
    %158 = vmatpush.bf16.msra.mxu0 %v135
    %159 = vmatmul.bf16.gmra.mxu0 %v101
    %v160 = vpop.f32.mrf.mxu0
    %v161 = vadd.f32 %v95, %v160
    %v162 = vpop.f32.mrf.mxu0
    %v163 = vadd.f32 %v95, %v162
    %164 = vdwg.mxu0
    %vm165 = vcmp.gt.f32.partialorder %v161, 0.0
    %vm166 = vcmp.gt.f32.partialorder %v163, 0.0
    %v167 = vmul.f32 %v161, 0.2
    %v168 = vmul.f32 %v163, 0.2
    %v169 = vsel %vm165, %v161, %v167
    %v170 = vsel %vm166, %v163, %v168
    %v171 = vpack.c.bf16 %v170, %v169
    %v172 = vld [vmem:[#allocation4] sm:$0xf]
    %v173 = vld [vmem:[#allocation4 + $0x4] sm:$0xf]
    %v174 = vld [vmem:[#allocation4 + $0x8] sm:$0xf]
    %v175 = vld [vmem:[#allocation4 + $0xc] sm:$0xf]
    %v176 = vld [vmem:[#allocation4 + $0x10] sm:$0xf]
    %v177 = vld [vmem:[#allocation4 + $0x14] sm:$0xf]
    %v178 = vld [vmem:[#allocation4 + $0x18] sm:$0xf]
    %v179 = vld [vmem:[#allocation4 + $0x1c] sm:$0xf]
    %v180 = vld [vmem:[#allocation4 + $0x20] sm:$0xf]
    %v181 = vld [vmem:[#allocation4 + $0x24] sm:$0xf]
    %v182 = vld [vmem:[#allocation4 + $0x28] sm:$0xf]
    %v183 = vld [vmem:[#allocation4 + $0x2c] sm:$0xf]
    %v184 = vld [vmem:[#allocation4 + $0x30] sm:$0xf]
    %v185 = vld [vmem:[#allocation4 + $0x34] sm:$0xf]
    %v186 = vld [vmem:[#allocation4 + $0x38] sm:$0xf]
    %v187 = vld [vmem:[#allocation4 + $0x3c] sm:$0xf]
    %v188 = vld [vmem:[%s4] sm:$0x1]
    %v190 = vperm.slane %v188, 0
    %v208 = vunpack.c.l.b16 %v172
    %v209 = vunpack.c.l.b16 %v173
    %v210 = vunpack.c.l.b16 %v174
    %v211 = vunpack.c.l.b16 %v175
    %v212 = vunpack.c.l.b16 %v176
    %v213 = vunpack.c.l.b16 %v177
    %v214 = vunpack.c.l.b16 %v178
    %v215 = vunpack.c.l.b16 %v179
    %v216 = vunpack.c.l.b16 %v180
    %v217 = vunpack.c.l.b16 %v181
    %v218 = vunpack.c.l.b16 %v182
    %v219 = vunpack.c.l.b16 %v183
    %v220 = vunpack.c.l.b16 %v184
    %v221 = vunpack.c.l.b16 %v185
    %v222 = vunpack.c.l.b16 %v186
    %v223 = vunpack.c.l.b16 %v187
    %v224 = vpack.c.b16 %v209, %v208
    %v225 = vpack.c.b16 %v211, %v210
    %v226 = vpack.c.b16 %v213, %v212
    %v227 = vpack.c.b16 %v215, %v214
    %v228 = vpack.c.b16 %v217, %v216
    %v229 = vpack.c.b16 %v219, %v218
    %v230 = vpack.c.b16 %v221, %v220
    %v231 = vpack.c.b16 %v223, %v222
    %240 = vmatpush.bf16.msra.mxu0 %v231
    %241 = vmatpush.bf16.msra.mxu0 %v230
    %242 = vmatpush.bf16.msra.mxu0 %v229
    %243 = vmatpush.bf16.msra.mxu0 %v228
    %244 = vmatpush.bf16.msra.mxu0 %v227
    %245 = vmatpush.bf16.msra.mxu0 %v226
    %246 = vmatpush.bf16.msra.mxu0 %v225
    %247 = vmatpush.bf16.msra.mxu0 %v224
    %248 = vmatmul.bf16.gmra.mxu0 %v171
    %v249 = vpop.f32.mrf.mxu0
    %v250 = vadd.f32 %v190, %v249
    %v251 = vpop.f32.mrf.mxu0
    %v252 = vadd.f32 %v190, %v251
    %253 = vdwg.mxu0
    %vm254 = vcmp.gt.f32.partialorder %v250, 0.0
    %vm255 = vcmp.gt.f32.partialorder %v252, 0.0
    %v256 = vmul.f32 %v250, 0.2
    %v257 = vmul.f32 %v252, 0.2
    %v258 = vsel %vm254, %v250, %v256
    %v259 = vsel %vm255, %v252, %v257
    %v260 = vpack.c.bf16 %v259, %v258
    %v261 = vld [vmem:[#allocation6] sm:$0xff]
    %v262 = vld [vmem:[#allocation6 + $0x8] sm:$0xff]
    %v263 = vld [vmem:[#allocation6 + $0x10] sm:$0xff]
    %v264 = vld [vmem:[#allocation6 + $0x18] sm:$0xff]
    %v265 = vld [vmem:[#allocation6 + $0x20] sm:$0xff]
    %v266 = vld [vmem:[#allocation6 + $0x28] sm:$0xff]
    %v267 = vld [vmem:[#allocation6 + $0x30] sm:$0xff]
    %v268 = vld [vmem:[#allocation6 + $0x38] sm:$0xff]
    %v269 = vld [vmem:[#allocation6 + $0x40] sm:$0xff]
    %v270 = vld [vmem:[#allocation6 + $0x48] sm:$0xff]
    %v271 = vld [vmem:[#allocation6 + $0x50] sm:$0xff]
    %v272 = vld [vmem:[#allocation6 + $0x58] sm:$0xff]
    %v273 = vld [vmem:[#allocation6 + $0x60] sm:$0xff]
    %v274 = vld [vmem:[#allocation6 + $0x68] sm:$0xff]
    %v275 = vld [vmem:[#allocation6 + $0x70] sm:$0xff]
    %v276 = vld [vmem:[#allocation6 + $0x78] sm:$0xff]
    %v277 = vld [vmem:[%s6] sm:$0x3]
    %v279 = vperm.slane %v277, 0
    %v280 = vperm.slane %v277, 1
    %v299 = vunpack.c.l.b16 %v261
    %v300 = vunpack.c.h.b16 %v261
    %v301 = vunpack.c.l.b16 %v262
    %v302 = vunpack.c.h.b16 %v262
    %v303 = vunpack.c.l.b16 %v263
    %v304 = vunpack.c.h.b16 %v263
    %v305 = vunpack.c.l.b16 %v264
    %v306 = vunpack.c.h.b16 %v264
    %v307 = vunpack.c.l.b16 %v265
    %v308 = vunpack.c.h.b16 %v265
    %v309 = vunpack.c.l.b16 %v266
    %v310 = vunpack.c.h.b16 %v266
    %v311 = vunpack.c.l.b16 %v267
    %v312 = vunpack.c.h.b16 %v267
    %v313 = vunpack.c.l.b16 %v268
    %v314 = vunpack.c.h.b16 %v268
    %v315 = vunpack.c.l.b16 %v269
    %v316 = vunpack.c.h.b16 %v269
    %v317 = vunpack.c.l.b16 %v270
    %v318 = vunpack.c.h.b16 %v270
    %v319 = vunpack.c.l.b16 %v271
    %v320 = vunpack.c.h.b16 %v271
    %v321 = vunpack.c.l.b16 %v272
    %v322 = vunpack.c.h.b16 %v272
    %v323 = vunpack.c.l.b16 %v273
    %v324 = vunpack.c.h.b16 %v273
    %v325 = vunpack.c.l.b16 %v274
    %v326 = vunpack.c.h.b16 %v274
    %v327 = vunpack.c.l.b16 %v275
    %v328 = vunpack.c.h.b16 %v275
    %v329 = vunpack.c.l.b16 %v276
    %v330 = vunpack.c.h.b16 %v276
    %v331 = vpack.c.b16 %v301, %v299
    %v332 = vpack.c.b16 %v302, %v300
    %v333 = vpack.c.b16 %v305, %v303
    %v334 = vpack.c.b16 %v306, %v304
    %v335 = vpack.c.b16 %v309, %v307
    %v336 = vpack.c.b16 %v310, %v308
    %v337 = vpack.c.b16 %v313, %v311
    %v338 = vpack.c.b16 %v314, %v312
    %v339 = vpack.c.b16 %v317, %v315
    %v340 = vpack.c.b16 %v318, %v316
    %v341 = vpack.c.b16 %v321, %v319
    %v342 = vpack.c.b16 %v322, %v320
    %v343 = vpack.c.b16 %v325, %v323
    %v344 = vpack.c.b16 %v326, %v324
    %v345 = vpack.c.b16 %v329, %v327
    %v346 = vpack.c.b16 %v330, %v328
    %363 = vmatpush.bf16.msra.mxu0 %v345
    %364 = vmatpush.bf16.msra.mxu0 %v343
    %365 = vmatpush.bf16.msra.mxu0 %v341
    %366 = vmatpush.bf16.msra.mxu0 %v339
    %367 = vmatpush.bf16.msra.mxu0 %v337
    %368 = vmatpush.bf16.msra.mxu0 %v335
    %369 = vmatpush.bf16.msra.mxu0 %v333
    %370 = vmatpush.bf16.msra.mxu0 %v331
    %371 = vmatmul.bf16.gmra.mxu0 %v260
    %v372 = vpop.f32.mrf.mxu0
    %v373 = vadd.f32 %v279, %v372
    %v374 = vpop.f32.mrf.mxu0
    %v375 = vadd.f32 %v279, %v374
    %376 = vdwg.mxu0
    %377 = vmatpush.bf16.msra.mxu0 %v346
    %378 = vmatpush.bf16.msra.mxu0 %v344
    %379 = vmatpush.bf16.msra.mxu0 %v342
    %380 = vmatpush.bf16.msra.mxu0 %v340
    %381 = vmatpush.bf16.msra.mxu0 %v338
    %382 = vmatpush.bf16.msra.mxu0 %v336
    %383 = vmatpush.bf16.msra.mxu0 %v334
    %384 = vmatpush.bf16.msra.mxu0 %v332
    %385 = vmatmul.bf16.gmra.mxu0 %v260
    %v386 = vpop.f32.mrf.mxu0
    %v387 = vadd.f32 %v280, %v386
    %v388 = vpop.f32.mrf.mxu0
    %v389 = vadd.f32 %v280, %v388
    %390 = vdwg.mxu0
    %391 = vst [vmem:[%s7] sm:$0xff] %v373
    %392 = vst [vmem:[%s7 + $0x8] sm:$0xff] %v375
    %393 = vst [vmem:[%s8] sm:$0xff] %v387
    %394 = vst [vmem:[%s8 + $0x8] sm:$0xff] %v389
    // Predicated region
    $region42: #{encoder_forward.1} parent=1 // pred_check
      _
    $region43: #{encoder_forward.1} parent=1 // pred_check_branch
      %396 = sbr.rel (0) target = $region45
    $region44: #{encoder_forward.1} parent=1 // pred_region
      _
    $region45: #{encoder_forward.1} parent=1 // pred_fallthru
      _
    // Predicated region
    $region46: #{encoder_forward.1} parent=1 // pred_check
      _
    $region47: #{encoder_forward.1} parent=1 // pred_check_branch
      %398 = sbr.rel (0) target = $region49
    $region48: #{encoder_forward.1} parent=1 // pred_region
      _
    $region49: #{encoder_forward.1} parent=1 // pred_fallthru
      _
    // Predicated region
    $region50: #{encoder_forward.1} parent=1 // pred_check
      _
    $region51: #{encoder_forward.1} parent=1 // pred_check_branch
      %400 = sbr.rel (0) target = $region53
    $region52: #{encoder_forward.1} parent=1 // pred_region
      _
    $region53: #{encoder_forward.1} parent=1 // pred_fallthru
      _
    // Predicated region
    $region54: #{encoder_forward.1} parent=1 // pred_check
      _
    $region55: #{encoder_forward.1} parent=1 // pred_check_branch
      %402 = sbr.rel (0) target = $region57
    $region56: #{encoder_forward.1} parent=1 // pred_region
      _
    $region57: #{encoder_forward.1} parent=1 // pred_fallthru
      _
    %403 = vsyncpa [#allocation3], 1
    %404 = vsyncpa [#allocation5], 1

</llo_original>
